<compile_context>
chip_gen: v7x
topology: tpu7x:2x2x1
jax: 0.10.0
libtpu: 0.0.40
codegen_flags: <defaults>
</compile_context>

<pallas_src>
import math

import jax
import jax.numpy as jnp
import numpy as np
from jax.experimental import pallas as pl
from jax.experimental.pallas import tpu as pltpu

LATENT = 100
IMG = 28
NPIX = IMG * IMG          # 784
LOG5 = math.log(5.0)
_VMEM_LIMIT = 32 * 1024 * 1024


def _pick_batch_tile(batch, max_tile):
    """Whole-batch block for small B; 8-aligned tile + cdiv grid for large B."""
    if batch <= max_tile:
        return batch, 1
    tile = max(8, (max_tile // 8) * 8)
    return tile, -(-batch // tile)


# ----------------------------------------------------------------------------
# Kernel 1: generator forward  o = tanh(Z @ W + b), lane-dense (B, 784) out.
# Z arrives f32 and is cast to bf16 in-kernel; W is bf16, accumulation f32.
# ----------------------------------------------------------------------------
def _gen_kernel(z_ref, w_ref, b_ref, o_ref):
    z = z_ref[...].astype(jnp.bfloat16)                        # (TB, 100)
    acc = jnp.dot(z, w_ref[...], preferred_element_type=jnp.float32)
    o_ref[...] = jnp.tanh(acc + b_ref[...])                    # (TB, 784) f32


def _gen_pallas(z, w, b, max_tile):
    batch = z.shape[0]
    n = w.shape[1]
    tb, steps = _pick_batch_tile(batch, max_tile)
    return pl.pallas_call(
        _gen_kernel,
        out_shape=jax.ShapeDtypeStruct((batch, n), jnp.float32),
        grid=(steps,),
        in_specs=[
            pl.BlockSpec((tb, LATENT), lambda i: (i, 0)),
            pl.BlockSpec((LATENT, n), lambda i: (0, 0)),
            pl.BlockSpec((1, n), lambda i: (0, 0)),
        ],
        out_specs=pl.BlockSpec((tb, n), lambda i: (i, 0)),
        compiler_params=pltpu.CompilerParams(
            dimension_semantics=("parallel",),
            vmem_limit_bytes=_VMEM_LIMIT),
    )(z, w, b)


# ----------------------------------------------------------------------------
# Kernel 2: fused log_prob over the anchored pixel columns only.
#   gen = tanh(Z @ W_a + b_a)                          (anchored cols, padded)
#   err = [sum_cols (gen - target_a)^2] / num_pixels + err_offset
#   err = 0 where err > threshold
#   out = log(sigmoid((err - 0.025)*200) / 5)          (stable log-sigmoid)
# Padded columns have W = b = target = 0 -> tanh(0) - 0 = 0 -> contribute 0.
# err_offset carries sum(target^2) over the non-anchored pixels.
# ----------------------------------------------------------------------------
def _make_logprob_kernel(inv_num_pixels, err_offset, threshold):
    def _kernel(z_ref, w_ref, b_ref, t_ref, o_ref):
        z = z_ref[...].astype(jnp.bfloat16)
        acc = jnp.dot(z, w_ref[...], preferred_element_type=jnp.float32)
        gen = jnp.tanh(acc + b_ref[...])                       # (TB, NA_PAD)
        diff = gen - t_ref[...]
        err = (jnp.sum(diff * diff, axis=-1, keepdims=True) * inv_num_pixels
               + err_offset)                                    # (TB, 1)
        err = jnp.where(err > threshold, 0.0, err)
        x = (err - 0.025) * 200.0
        # log(sigmoid(x)) = min(x, 0) - log1p(exp(-|x|)); then - log(5).
        o_ref[...] = (jnp.minimum(x, 0.0)
                      - jnp.log1p(jnp.exp(-jnp.abs(x))) - LOG5)
    return _kernel


def _logprob_pallas(kernel, z, w, b, t, max_tile):
    batch = z.shape[0]
    n = w.shape[1]
    tb, steps = _pick_batch_tile(batch, max_tile)
    return pl.pallas_call(
        kernel,
        out_shape=jax.ShapeDtypeStruct((batch, 1), jnp.float32),
        grid=(steps,),
        in_specs=[
            pl.BlockSpec((tb, LATENT), lambda i: (i, 0)),
            pl.BlockSpec((LATENT, n), lambda i: (0, 0)),
            pl.BlockSpec((1, n), lambda i: (0, 0)),
            pl.BlockSpec((1, n), lambda i: (0, 0)),
        ],
        out_specs=pl.BlockSpec((tb, 1), lambda i: (i, 0)),
        compiler_params=pltpu.CompilerParams(
            dimension_semantics=("parallel",),
            vmem_limit_bytes=_VMEM_LIMIT),
    )(z, w, b, t)


# ----------------------------------------------------------------------------
# ProbGenerator wrapper
# ----------------------------------------------------------------------------
class ProbGenerator:
    def __init__(self, w, b, anchor, target, threshold=0.05, eps=0.1,
                 max_batch_tile=512):
        # One-time host-side layout work.
        w = np.asarray(w, np.float32).reshape(LATENT, NPIX)
        b = np.asarray(b, np.float32).reshape(1, NPIX)
        anchor = np.asarray(anchor, np.float32).reshape(IMG, IMG)
        target = np.asarray(target, np.float32).reshape(IMG, IMG)

        anchor_flat = anchor.reshape(NPIX)
        target_flat = target.reshape(NPIX)
        # The anchored-column gather assumes a {0,1} mask (true for the
        # original module's usage; num_pixels = anchor.sum()).
        if not np.all((anchor_flat == 0.0) | (anchor_flat == 1.0)):
            raise NotImplementedError(
                "anchored-column gather assumes a binary {0,1} anchor mask")

        idx = np.nonzero(anchor_flat != 0.0)[0]
        na = int(idx.size)
        na_pad = max(128, -(-na // 128) * 128)     # lane multiple, >= 1 tile

        self.anchor = jnp.asarray(anchor)
        self.target = jnp.asarray(target)
        self.num_pixels = float(anchor_flat.sum())
        self.threshold = float(threshold)
        self.h = self.threshold / (-1.0 * math.log(eps))

        # Constant contribution of the non-anchored pixels:
        # (gen*anchor - target)^2 == target^2 where anchor == 0.
        err_offset = float(
            np.sum(np.square(target_flat[anchor_flat == 0.0])) /
            self.num_pixels)

        # forward(): full-width generator weights, bf16 storage / f32 accum.
        self.w_fwd = jnp.asarray(w, jnp.bfloat16)               # (100, 784)
        self.b_fwd = jnp.asarray(b, jnp.float32)                # (1, 784)

        # log_prob(): anchored columns only, zero-padded to na_pad lanes.
        w_lp = np.zeros((LATENT, na_pad), np.float32)
        w_lp[:, :na] = w[:, idx]
        b_lp = np.zeros((1, na_pad), np.float32)
        b_lp[:, :na] = b[:, idx]
        t_lp = np.zeros((1, na_pad), np.float32)
        t_lp[:, :na] = target_flat[idx]
        self.w_lp = jnp.asarray(w_lp, jnp.bfloat16)              # (100, 256)
        self.b_lp = jnp.asarray(b_lp, jnp.float32)
        self.t_lp = jnp.asarray(t_lp, jnp.float32)

        lp_kernel = _make_logprob_kernel(
            1.0 / self.num_pixels, err_offset, self.threshold)
        max_tile = int(max_batch_tile)

        @jax.jit
        def _forward_fn(z_flat, w_fwd, b_fwd):
            return _gen_pallas(z_flat, w_fwd, b_fwd, max_tile)   # (B, 784)

        @jax.jit
        def _logprob_fn(z_flat, w_lp_, b_lp_, t_lp_):
            out = _logprob_pallas(lp_kernel, z_flat, w_lp_, b_lp_, t_lp_,
                                  max_tile)                      # (B, 1)
            return out[:, 0]

        self._forward_fn = _forward_fn
        self._logprob_fn = _logprob_fn

    def forward(self, Z):
        # Z: (B, 100, 1, 1) NCHW latent, like the PyTorch DCGAN input.
        Z = jnp.asarray(Z)
        B = Z.shape[0]
        z_flat = Z.reshape(B, LATENT).astype(jnp.float32)
        out = self._forward_fn(z_flat, self.w_fwd, self.b_fwd)   # (B, 784)
        return out.reshape(B, 1, IMG, IMG)                       # NCHW output

    def log_prob(self, Z):
        Z = jnp.asarray(Z)
        B = Z.shape[0]
        z_flat = Z.reshape(B, LATENT).astype(jnp.float32)
        return self._logprob_fn(z_flat, self.w_lp, self.b_lp, self.t_lp)


if __name__ == "__main__":
    key = jax.random.PRNGKey(0)
    k_w, k_b, k_z, k_z2 = jax.random.split(key, 4)

    B = 8
    w = (jax.random.normal(k_w, (LATENT, NPIX), dtype=jnp.float32)
         * (1.0 / math.sqrt(LATENT)))
    b = jax.random.normal(k_b, (1, NPIX), dtype=jnp.float32) * 0.01

    # Deterministic binary anchor mask (upper-left quadrant).
    rows = jnp.arange(IMG)
    anchor = ((rows[:, None] < IMG // 2) & (rows[None, :] < IMG // 2)
              ).astype(jnp.float32)

    Z = jax.random.normal(k_z, (B, LATENT, 1, 1), dtype=jnp.float32)
    z_flat = Z.reshape(B, LATENT)

    # Reference generator path matching the kernel's bf16 weight storage.
    w_q = w.astype(jnp.bfloat16)
    ref_flat = jnp.tanh(
        jnp.dot(z_flat.astype(jnp.bfloat16), w_q,
                preferred_element_type=jnp.float32) + b)          # (B, 784)

    # Target: anchored part = sample-0 image (so sample 0 stays below the
    # threshold, the rest get gated), plus a small constant OUTSIDE the anchor
    # to exercise the folded err_offset constant.
    anchor_1d = anchor.reshape(NPIX)
    target_flat = jnp.where(anchor_1d > 0, ref_flat[0], 0.05)
    target = target_flat.reshape(IMG, IMG)

    pg = ProbGenerator(w, b, anchor, target, threshold=0.05, eps=0.1)

    img = pg.forward(Z)
    lp = pg.log_prob(Z)
    jax.block_until_ready(img)
    jax.block_until_ready(lp)

    assert img.shape == (B, 1, IMG, IMG)
    assert lp.shape == (B,)

    # Plain JAX reference (full 28x28 semantics of the original module).
    ref_img = ref_flat.reshape(B, 1, IMG, IMG)
    gen = ref_flat.reshape(B, IMG, IMG)
    yhat = gen * anchor[None]
    err = jnp.sum((yhat - target[None]) ** 2, axis=(1, 2)) / jnp.sum(anchor)
    err = jnp.where(err > 0.05, 0.0, err)
    ref_lp = jnp.log(jax.nn.sigmoid((err - 0.025) * 200.0) / 5.0)

    assert jnp.allclose(img, ref_img, atol=1e-3, rtol=1e-3), \
        float(jnp.max(jnp.abs(img - ref_img)))
    assert jnp.allclose(lp, ref_lp, atol=5e-3, rtol=1e-3), \
        float(jnp.max(jnp.abs(lp - ref_lp)))

    # --- Batch-tiled path (grid > 1, partial last block, "parallel" axis) ---
    B2 = 80
    Z2 = jax.random.normal(k_z2, (B2, LATENT, 1, 1), dtype=jnp.float32)
    pg_tiled = ProbGenerator(w, b, anchor, target, threshold=0.05, eps=0.1,
                             max_batch_tile=32)   # grid = ceil(80/32) = 3
    img2 = pg_tiled.forward(Z2)
    lp2 = pg_tiled.log_prob(Z2)
    jax.block_until_ready(img2)
    jax.block_until_ready(lp2)

    z2_flat = Z2.reshape(B2, LATENT)
    ref2_flat = jnp.tanh(
        jnp.dot(z2_flat.astype(jnp.bfloat16), w_q,
                preferred_element_type=jnp.float32) + b)
    gen2 = ref2_flat.reshape(B2, IMG, IMG)
    err2 = jnp.sum((gen2 * anchor[None] - target[None]) ** 2,
                   axis=(1, 2)) / jnp.sum(anchor)
    err2 = jnp.where(err2 > 0.05, 0.0, err2)
    ref_lp2 = jnp.log(jax.nn.sigmoid((err2 - 0.025) * 200.0) / 5.0)

    assert jnp.allclose(img2, ref2_flat.reshape(B2, 1, IMG, IMG),
                        atol=1e-3, rtol=1e-3), \
        float(jnp.max(jnp.abs(img2 - ref2_flat.reshape(B2, 1, IMG, IMG))))
    assert jnp.allclose(lp2, ref_lp2, atol=5e-3, rtol=1e-3), \
        float(jnp.max(jnp.abs(lp2 - ref_lp2)))

    print("KERNEL_OK")
</pallas_src>

<mosaic_0001>
module attributes {stable_mosaic.version = 11 : i64} {
  func.func @_gen_kernel(%arg0: i32, %arg1: memref<8x100xf32, #tpu.memory_space<vmem>>, %arg2: memref<100x784xbf16, #tpu.memory_space<vmem>>, %arg3: memref<1x784xf32, #tpu.memory_space<vmem>>, %arg4: memref<8x784xf32, #tpu.memory_space<vmem>>) attributes {dimension_semantics = [#tpu.dimension_semantics<parallel>], iteration_bounds = array<i64: 1>, scalar_prefetch = 0 : i64, scratch_operands = 0 : i64, tpu.core_type = #tpu.core_type<tc>, window_params = [{transform_indices = @transform_0, window_bounds = array<i64: 8, 100>}, {pipeline_mode = #tpu.pipeline_mode<synchronous>, transform_indices = @transform_1, window_bounds = array<i64: 100, 784>}, {pipeline_mode = #tpu.pipeline_mode<synchronous>, transform_indices = @transform_2, window_bounds = array<i64: 1, 784>}, {transform_indices = @transform_3, window_bounds = array<i64: 8, 784>}]} {
    %c0 = arith.constant 0 : index
    %c0_0 = arith.constant 0 : index
    %0 = vector.load %arg1[%c0, %c0_0] : memref<8x100xf32, #tpu.memory_space<vmem>>, vector<8x100xf32>
    %1 = arith.truncf %0 : vector<8x100xf32> to vector<8x100xbf16>
    %c0_1 = arith.constant 0 : index
    %c0_2 = arith.constant 0 : index
    %2 = vector.load %arg2[%c0_1, %c0_2] : memref<100x784xbf16, #tpu.memory_space<vmem>>, vector<100x784xbf16>
    %cst = arith.constant dense<0.000000e+00> : vector<8x784xf32>
    %3 = tpu.matmul %1, %2, %cst {dimension_numbers = #tpu.dot_dimension_numbers<[1], [0], [0], [1], [0, 0, 1, 1], [], []>} : vector<8x100xbf16>, vector<100x784xbf16>, vector<8x784xf32> -> vector<8x784xf32>
    %c0_3 = arith.constant 0 : index
    %c0_4 = arith.constant 0 : index
    %4 = vector.load %arg3[%c0_3, %c0_4] : memref<1x784xf32, #tpu.memory_space<vmem>>, vector<1x784xf32>
    %5 = vector.broadcast %4 : vector<1x784xf32> to vector<8x784xf32>
    %6 = arith.addf %3, %5 : vector<8x784xf32>
    %7 = math.tanh %6 : vector<8x784xf32>
    %c0_5 = arith.constant 0 : index
    %c0_6 = arith.constant 0 : index
    %8 = vector.load %arg4[%c0_5, %c0_6] : memref<8x784xf32, #tpu.memory_space<vmem>>, vector<8x784xf32>
    tpu.vector_store %arg4[%c0_5, %c0_6], %7 {strides = array<i32>} : memref<8x784xf32, #tpu.memory_space<vmem>>, vector<8x784xf32>,
    return
  }
  func.func @transform_0(%arg0: i32) -> (i32, i32) {
    %c0_i32 = arith.constant 0 : i32
    %c0_i32_0 = arith.constant 0 : i32
    return %arg0, %c0_i32 : i32, i32
  }
  func.func @transform_1(%arg0: i32) -> (i32, i32) {
    %c0_i32 = arith.constant 0 : i32
    %c0_i32_0 = arith.constant 0 : i32
    %c0_i32_1 = arith.constant 0 : i32
    return %c0_i32, %c0_i32_0 : i32, i32
  }
  func.func @transform_2(%arg0: i32) -> (i32, i32) {
    %c0_i32 = arith.constant 0 : i32
    %c0_i32_0 = arith.constant 0 : i32
    %c0_i32_1 = arith.constant 0 : i32
    return %c0_i32, %c0_i32_0 : i32, i32
  }
  func.func @transform_3(%arg0: i32) -> (i32, i32) {
    %c0_i32 = arith.constant 0 : i32
    %c0_i32_0 = arith.constant 0 : i32
    return %arg0, %c0_i32 : i32, i32
  }
}

</mosaic_0001>

<llo_original>
// kernel: _forward_fn.1
$region0: #{_forward_fn.1}
  #allocation0 [shape = 'u32[]', space=smem, size = 0x4, offset = 0x4, fixed_abs, tag = 'smem constant byte address 0x4 - core index']
  #allocation1 [shape = 'u32[144,128]{1,0:T(1,128)}', space=vmem, size = 0x12000, scoped, tag = 'internal scratch']
  %s0 = inlined_call_operand.hbm [shape: f32[8,100], index: 0, kind: input, shape index: {}]
  %s1 = inlined_call_operand.hbm [shape: bf16[100,784], index: 1, kind: input, shape index: {}]
  %s2 = inlined_call_operand.vmem [shape: f32[1,784], index: 2, kind: input, shape index: {}]
  %s3 = inlined_call_operand.hbm [shape: f32[8,784], index: 3, kind: output, shape index: {}]
  %s4 = sld [smem:[#allocation0]]
  $region30: #{_forward_fn.1} parent=0
    _
  %s6 = ssub.s32 1, %s4
  %s7 = scalar_select 0, %s6, %s4
  $region1: #{_forward_fn.1} parent=0
    #allocation2 [shape = 'u8[4096]{0}', space=vmem, size = 0x1000, scoped, tag = 'input window, operand 0, single buffered']
    #allocation3 [shape = 's32[1]{0}', space=sflag, size = 0x4, scoped, tag = 'scoped memory for _forward_fn.1']
    #allocation4 [shape = 's32[1]{0}', space=sflag, size = 0x4, scoped, tag = 'scoped memory for _forward_fn.1']
    #allocation5 [shape = 'u8[186368]{0}', space=vmem, size = 0x2d800, scoped, tag = 'input window, operand 1, single buffered']
    #allocation6 [shape = 's32[1]{0}', space=sflag, size = 0x4, scoped, tag = 'scoped memory for _forward_fn.1']
    #allocation7 [shape = 'u8[28672]{0}', space=vmem, size = 0x7000, scoped, tag = 'output window, operand 0, single buffered']
    %8 = vsyncpa [#allocation3], 0
    %9 = vsyncpa [#allocation6], 0
    %10 = vsyncpa [#allocation4], 0
    // Predicated region
    $region2: #{_forward_fn.1} parent=1 // pred_check
      _
    $region3: #{_forward_fn.1} parent=1 // pred_check_branch
      %12 = sbr.rel (0) target = $region5
    $region4: #{_forward_fn.1} parent=1 // pred_region
      %s14 = ssub.s32 128, 128
      %15 = vsyncadd [#allocation3], %s14
      %s17 = sshll.u32 [#allocation2], 4
      %s18 = int_to_ptr.vmem [resolvable:$true] %s17
      %20 = dma.hbm_to_vmem [thread:$0]  %s0, 128, %s18, [#allocation3]
    $region5: #{_forward_fn.1} parent=1 // pred_fallthru
      _
    // Predicated region
    $region6: #{_forward_fn.1} parent=1 // pred_check
      _
    $region7: #{_forward_fn.1} parent=1 // pred_check_branch
      %22 = sbr.rel (0) target = $region9
    $region8: #{_forward_fn.1} parent=1 // pred_region
      %s24 = ssub.s32 5824, 5824
      %25 = vsyncadd [#allocation6], %s24
      %s26 = sshll.u32 [#allocation5], 4
      %s27 = int_to_ptr.vmem [resolvable:$true] %s26
      %32 = dma.hbm_to_vmem [thread:$0]  %s1, 5824, %s27, [#allocation6], 448, 448, 28
    $region9: #{_forward_fn.1} parent=1 // pred_fallthru
      _
    // Predicated region
    $region10: #{_forward_fn.1} parent=1 // pred_check
      _
    $region11: #{_forward_fn.1} parent=1 // pred_check_branch
      %34 = sbr.rel (0) target = $region13
    $region12: #{_forward_fn.1} parent=1 // pred_region
      _
    $region13: #{_forward_fn.1} parent=1 // pred_fallthru
      _
    // Predicated region
    $region14: #{_forward_fn.1} parent=1 // pred_check
      _
    $region15: #{_forward_fn.1} parent=1 // pred_check_branch
      %36 = sbr.rel (0) target = $region17
    $region16: #{_forward_fn.1} parent=1 // pred_region
      %37 = dma.done [#allocation3], 128
    $region17: #{_forward_fn.1} parent=1 // pred_fallthru
      _
    // Predicated region
    $region18: #{_forward_fn.1} parent=1 // pred_check
      _
    $region19: #{_forward_fn.1} parent=1 // pred_check_branch
      %39 = sbr.rel (0) target = $region21
    $region20: #{_forward_fn.1} parent=1 // pred_region
      %40 = dma.done [#allocation6], 5824
    $region21: #{_forward_fn.1} parent=1 // pred_fallthru
      _
    %v42 = vld [vmem:[#allocation2] sm:$0xff]
    %v43 = vpack.c.bf16 %v42, %v42
    %v44 = vld [vmem:[#allocation5] sm:$0xff]
    %v45 = vld [vmem:[#allocation5 + $0x8] sm:$0xff]
    %v46 = vld [vmem:[#allocation5 + $0x10] sm:$0xff]
    %v47 = vld [vmem:[#allocation5 + $0x18] sm:$0xf]
    %v48 = vld [vmem:[#allocation5 + $0x1c] sm:$0xff]
    %v49 = vld [vmem:[#allocation5 + $0x24] sm:$0xff]
    %v50 = vld [vmem:[#allocation5 + $0x2c] sm:$0xff]
    %v51 = vld [vmem:[#allocation5 + $0x34] sm:$0xf]
    %v52 = vld [vmem:[#allocation5 + $0x38] sm:$0xff]
    %v53 = vld [vmem:[#allocation5 + $0x40] sm:$0xff]
    %v54 = vld [vmem:[#allocation5 + $0x48] sm:$0xff]
    %v55 = vld [vmem:[#allocation5 + $0x50] sm:$0xf]
    %v56 = vld [vmem:[#allocation5 + $0x54] sm:$0xff]
    %v57 = vld [vmem:[#allocation5 + $0x5c] sm:$0xff]
    %v58 = vld [vmem:[#allocation5 + $0x64] sm:$0xff]
    %v59 = vld [vmem:[#allocation5 + $0x6c] sm:$0xf]
    %v60 = vld [vmem:[#allocation5 + $0x70] sm:$0xff]
    %v61 = vld [vmem:[#allocation5 + $0x78] sm:$0xff]
    %v62 = vld [vmem:[#allocation5 + $0x80] sm:$0xff]
    %v63 = vld [vmem:[#allocation5 + $0x88] sm:$0xf]
    %v64 = vld [vmem:[#allocation5 + $0x8c] sm:$0xff]
    %v65 = vld [vmem:[#allocation5 + $0x94] sm:$0xff]
    %v66 = vld [vmem:[#allocation5 + $0x9c] sm:$0xff]
    %v67 = vld [vmem:[#allocation5 + $0xa4] sm:$0xf]
    %v68 = vld [vmem:[#allocation5 + $0xa8] sm:$0xff]
    %v69 = vld [vmem:[#allocation5 + $0xb0] sm:$0xff]
    %v70 = vld [vmem:[#allocation5 + $0xb8] sm:$0xff]
    %v71 = vld [vmem:[#allocation5 + $0xc0] sm:$0xf]
    %v72 = vld [vmem:[#allocation5 + $0xc4] sm:$0xff]
    %v73 = vld [vmem:[#allocation5 + $0xcc] sm:$0xff]
    %v74 = vld [vmem:[#allocation5 + $0xd4] sm:$0xff]
    %v75 = vld [vmem:[#allocation5 + $0xdc] sm:$0xf]
    %v76 = vld [vmem:[#allocation5 + $0xe0] sm:$0xff]
    %v77 = vld [vmem:[#allocation5 + $0xe8] sm:$0xff]
    %v78 = vld [vmem:[#allocation5 + $0xf0] sm:$0xff]
    %v79 = vld [vmem:[#allocation5 + $0xf8] sm:$0xf]
    %v80 = vld [vmem:[#allocation5 + $0xfc] sm:$0xff]
    %v81 = vld [vmem:[#allocation5 + $0x104] sm:$0xff]
    %v82 = vld [vmem:[#allocation5 + $0x10c] sm:$0xff]
    %v83 = vld [vmem:[#allocation5 + $0x114] sm:$0xf]
    %v84 = vld [vmem:[#allocation5 + $0x118] sm:$0xff]
    %v85 = vld [vmem:[#allocation5 + $0x120] sm:$0xff]
    %v86 = vld [vmem:[#allocation5 + $0x128] sm:$0xff]
    %v87 = vld [vmem:[#allocation5 + $0x130] sm:$0xf]
    %v88 = vld [vmem:[#allocation5 + $0x134] sm:$0xff]
    %v89 = vld [vmem:[#allocation5 + $0x13c] sm:$0xff]
    %v90 = vld [vmem:[#allocation5 + $0x144] sm:$0xff]
    %v91 = vld [vmem:[#allocation5 + $0x14c] sm:$0xf]
    %v92 = vld [vmem:[#allocation5 + $0x150] sm:$0x33]
    %v93 = vld [vmem:[#allocation5 + $0x158] sm:$0x33]
    %v94 = vld [vmem:[#allocation5 + $0x160] sm:$0x33]
    %v95 = vld [vmem:[#allocation5 + $0x168] sm:$0x3]
    %v96 = vld [vmem:[%s2] sm:$0x7f]
    %v98 = vlaneseq
    %v99 = vshrl.u32 %v98, 7
    %v100 = vsub.s32 0, %v99
    %v101 = vrot.slane %v96, %v100
    %v102 = vlaneseq
    %v103 = vshrl.u32 %v102, 7
    %v104 = vsub.s32 1, %v103
    %v105 = vrot.slane %v96, %v104
    %v106 = vlaneseq
    %v107 = vshrl.u32 %v106, 7
    %v108 = vsub.s32 2, %v107
    %v109 = vrot.slane %v96, %v108
    %v110 = vlaneseq
    %v111 = vshrl.u32 %v110, 7
    %v112 = vsub.s32 3, %v111
    %v113 = vrot.slane %v96, %v112
    %v114 = vlaneseq
    %v115 = vshrl.u32 %v114, 7
    %v116 = vsub.s32 4, %v115
    %v117 = vrot.slane %v96, %v116
    %v118 = vlaneseq
    %v119 = vshrl.u32 %v118, 7
    %v120 = vsub.s32 5, %v119
    %v121 = vrot.slane %v96, %v120
    %v122 = vlaneseq
    %v123 = vshrl.u32 %v122, 7
    %v124 = vsub.s32 6, %v123
    %v125 = vrot.slane %v96, %v124
    %v185 = vunpack.c.l.b16 %v44
    %v186 = vunpack.c.h.b16 %v44
    %v187 = vunpack.c.l.b16 %v45
    %v188 = vunpack.c.h.b16 %v45
    %v189 = vunpack.c.l.b16 %v46
    %v190 = vunpack.c.h.b16 %v46
    %v191 = vunpack.c.l.b16 %v47
    %v192 = vunpack.c.l.b16 %v48
    %v193 = vunpack.c.h.b16 %v48
    %v194 = vunpack.c.l.b16 %v49
    %v195 = vunpack.c.h.b16 %v49
    %v196 = vunpack.c.l.b16 %v50
    %v197 = vunpack.c.h.b16 %v50
    %v198 = vunpack.c.l.b16 %v51
    %v199 = vunpack.c.l.b16 %v52
    %v200 = vunpack.c.h.b16 %v52
    %v201 = vunpack.c.l.b16 %v53
    %v202 = vunpack.c.h.b16 %v53
    %v203 = vunpack.c.l.b16 %v54
    %v204 = vunpack.c.h.b16 %v54
    %v205 = vunpack.c.l.b16 %v55
    %v206 = vunpack.c.l.b16 %v56
    %v207 = vunpack.c.h.b16 %v56
    %v208 = vunpack.c.l.b16 %v57
    %v209 = vunpack.c.h.b16 %v57
    %v210 = vunpack.c.l.b16 %v58
    %v211 = vunpack.c.h.b16 %v58
    %v212 = vunpack.c.l.b16 %v59
    %v213 = vunpack.c.l.b16 %v60
    %v214 = vunpack.c.h.b16 %v60
    %v215 = vunpack.c.l.b16 %v61
    %v216 = vunpack.c.h.b16 %v61
    %v217 = vunpack.c.l.b16 %v62
    %v218 = vunpack.c.h.b16 %v62
    %v219 = vunpack.c.l.b16 %v63
    %v220 = vunpack.c.l.b16 %v64
    %v221 = vunpack.c.h.b16 %v64
    %v222 = vunpack.c.l.b16 %v65
    %v223 = vunpack.c.h.b16 %v65
    %v224 = vunpack.c.l.b16 %v66
    %v225 = vunpack.c.h.b16 %v66
    %v226 = vunpack.c.l.b16 %v67
    %v227 = vunpack.c.l.b16 %v68
    %v228 = vunpack.c.h.b16 %v68
    %v229 = vunpack.c.l.b16 %v69
    %v230 = vunpack.c.h.b16 %v69
    %v231 = vunpack.c.l.b16 %v70
    %v232 = vunpack.c.h.b16 %v70
    %v233 = vunpack.c.l.b16 %v71
    %v234 = vunpack.c.l.b16 %v72
    %v235 = vunpack.c.h.b16 %v72
    %v236 = vunpack.c.l.b16 %v73
    %v237 = vunpack.c.h.b16 %v73
    %v238 = vunpack.c.l.b16 %v74
    %v239 = vunpack.c.h.b16 %v74
    %v240 = vunpack.c.l.b16 %v75
    %v241 = vunpack.c.l.b16 %v76
    %v242 = vunpack.c.h.b16 %v76
    %v243 = vunpack.c.l.b16 %v77
    %v244 = vunpack.c.h.b16 %v77
    %v245 = vunpack.c.l.b16 %v78
    %v246 = vunpack.c.h.b16 %v78
    %v247 = vunpack.c.l.b16 %v79
    %v248 = vunpack.c.l.b16 %v80
    %v249 = vunpack.c.h.b16 %v80
    %v250 = vunpack.c.l.b16 %v81
    %v251 = vunpack.c.h.b16 %v81
    %v252 = vunpack.c.l.b16 %v82
    %v253 = vunpack.c.h.b16 %v82
    %v254 = vunpack.c.l.b16 %v83
    %v255 = vunpack.c.l.b16 %v84
    %v256 = vunpack.c.h.b16 %v84
    %v257 = vunpack.c.l.b16 %v85
    %v258 = vunpack.c.h.b16 %v85
    %v259 = vunpack.c.l.b16 %v86
    %v260 = vunpack.c.h.b16 %v86
    %v261 = vunpack.c.l.b16 %v87
    %v262 = vunpack.c.l.b16 %v88
    %v263 = vunpack.c.h.b16 %v88
    %v264 = vunpack.c.l.b16 %v89
    %v265 = vunpack.c.h.b16 %v89
    %v266 = vunpack.c.l.b16 %v90
    %v267 = vunpack.c.h.b16 %v90
    %v268 = vunpack.c.l.b16 %v91
    %v269 = vunpack.c.l.b16 %v92
    %v270 = vunpack.c.h.b16 %v92
    %v271 = vunpack.c.l.b16 %v93
    %v272 = vunpack.c.h.b16 %v93
    %v273 = vunpack.c.l.b16 %v94
    %v274 = vunpack.c.h.b16 %v94
    %v275 = vunpack.c.l.b16 %v95
    %v276 = vpack.c.b16 %v192, %v185
    %v277 = vpack.c.b16 %v193, %v186
    %v278 = vpack.c.b16 %v194, %v187
    %v279 = vpack.c.b16 %v195, %v188
    %v280 = vpack.c.b16 %v196, %v189
    %v281 = vpack.c.b16 %v197, %v190
    %v282 = vpack.c.b16 %v198, %v191
    %v283 = vpack.c.b16 %v206, %v199
    %v284 = vpack.c.b16 %v207, %v200
    %v285 = vpack.c.b16 %v208, %v201
    %v286 = vpack.c.b16 %v209, %v202
    %v287 = vpack.c.b16 %v210, %v203
    %v288 = vpack.c.b16 %v211, %v204
    %v289 = vpack.c.b16 %v212, %v205
    %v290 = vpack.c.b16 %v220, %v213
    %v291 = vpack.c.b16 %v221, %v214
    %v292 = vpack.c.b16 %v222, %v215
    %v293 = vpack.c.b16 %v223, %v216
    %v294 = vpack.c.b16 %v224, %v217
    %v295 = vpack.c.b16 %v225, %v218
    %v296 = vpack.c.b16 %v226, %v219
    %v297 = vpack.c.b16 %v234, %v227
    %v298 = vpack.c.b16 %v235, %v228
    %v299 = vpack.c.b16 %v236, %v229
    %v300 = vpack.c.b16 %v237, %v230
    %v301 = vpack.c.b16 %v238, %v231
    %v302 = vpack.c.b16 %v239, %v232
    %v303 = vpack.c.b16 %v240, %v233
    %v304 = vpack.c.b16 %v248, %v241
    %v305 = vpack.c.b16 %v249, %v242
    %v306 = vpack.c.b16 %v250, %v243
    %v307 = vpack.c.b16 %v251, %v244
    %v308 = vpack.c.b16 %v252, %v245
    %v309 = vpack.c.b16 %v253, %v246
    %v310 = vpack.c.b16 %v254, %v247
    %v311 = vpack.c.b16 %v262, %v255
    %v312 = vpack.c.b16 %v263, %v256
    %v313 = vpack.c.b16 %v264, %v257
    %v314 = vpack.c.b16 %v265, %v258
    %v315 = vpack.c.b16 %v266, %v259
    %v316 = vpack.c.b16 %v267, %v260
    %v317 = vpack.c.b16 %v268, %v261
    %v318 = vpack.c.b16 %v269, %v269
    %v319 = vpack.c.b16 %v270, %v270
    %v320 = vpack.c.b16 %v271, %v271
    %v321 = vpack.c.b16 %v272, %v272
    %v322 = vpack.c.b16 %v273, %v273
    %v323 = vpack.c.b16 %v274, %v274
    %v324 = vpack.c.b16 %v275, %v275
    %vm367 = vcmask 818176
    %v369 = vsel %vm367, %v43, 0
    %vm371 = vcmask 1041408
    %v373 = vsel %vm371, %v318, 0
    %v376 = vsel %vm371, %v319, 0
    %v379 = vsel %vm371, %v320, 0
    %v382 = vsel %vm371, %v321, 0
    %v385 = vsel %vm371, %v322, 0
    %v388 = vsel %vm371, %v323, 0
    %v391 = vsel %vm371, %v324, 0
    %393 = vmatprep.subr.bf16.mxu0 %v277
    %394 = vmatpush1.bf16.msra.mxu0 %v276
    %395 = vmatprep.subr.bf16.mxu0 %v284
    %396 = vmatpush1.bf16.msra.mxu0 %v283
    %397 = vmatprep.subr.bf16.mxu0 %v291
    %398 = vmatpush1.bf16.msra.mxu0 %v290
    %399 = vmatprep.subr.bf16.mxu0 %v298
    %400 = vmatpush1.bf16.msra.mxu0 %v297
    %401 = vmatprep.subr.bf16.mxu0 %v305
    %402 = vmatpush1.bf16.msra.mxu0 %v304
    %403 = vmatprep.subr.bf16.mxu0 %v312
    %404 = vmatpush1.bf16.msra.mxu0 %v311
    %405 = vmatprep.subr.bf16.mxu0 %v376
    %406 = vmatpush1.bf16.msra.mxu0 %v373
    %407 = vmatprep.subr.bf16.mxu0 0
    %408 = vmatpush1.bf16.msra.mxu0 0
    %409 = vmatprep.subr.bf16.mxu0 0
    %410 = vmatpush1.bf16.msra.mxu0 0
    %411 = vmatprep.subr.bf16.mxu0 0
    %412 = vmatpush1.bf16.msra.mxu0 0
    %413 = vmatprep.subr.bf16.mxu0 0
    %414 = vmatpush1.bf16.msra.mxu0 0
    %415 = vmatprep.subr.bf16.mxu0 0
    %416 = vmatpush1.bf16.msra.mxu0 0
    %417 = vmatprep.subr.bf16.mxu0 0
    %418 = vmatpush1.bf16.msra.mxu0 0
    %419 = vmatprep.subr.bf16.mxu0 0
    %420 = vmatpush1.bf16.msra.mxu0 0
    %421 = vmatprep.subr.bf16.mxu0 0
    %422 = vmatpush1.bf16.msra.mxu0 0
    %423 = vmatprep.subr.bf16.mxu0 0
    %424 = vmatpush1.bf16.msra.mxu0 0
    %425 = vmatprep.mubr.bf16.mxu0 0
    %426 = vmatmul.mubr.bf16.gmra.mrb[0].mxu0 %v369
    %v427 = vpop.f32.mrb[0].mxu0
    %v428 = vadd.f32 %v101, %v427
    %v429 = vpop.f32.mrb[0].mxu0
    %v430 = vadd.f32 %v105, %v429
    %v431 = vpop.f32.mrb[0].mxu0
    %v432 = vpop.f32.mrb[0].mxu0
    %433 = vdwg.mxu0
    %434 = vmatprep.subr.bf16.mxu0 %v279
    %435 = vmatpush1.bf16.msra.mxu0 %v278
    %436 = vmatprep.subr.bf16.mxu0 %v286
    %437 = vmatpush1.bf16.msra.mxu0 %v285
    %438 = vmatprep.subr.bf16.mxu0 %v293
    %439 = vmatpush1.bf16.msra.mxu0 %v292
    %440 = vmatprep.subr.bf16.mxu0 %v300
    %441 = vmatpush1.bf16.msra.mxu0 %v299
    %442 = vmatprep.subr.bf16.mxu0 %v307
    %443 = vmatpush1.bf16.msra.mxu0 %v306
    %444 = vmatprep.subr.bf16.mxu0 %v314
    %445 = vmatpush1.bf16.msra.mxu0 %v313
    %446 = vmatprep.subr.bf16.mxu0 %v382
    %447 = vmatpush1.bf16.msra.mxu0 %v379
    %448 = vmatprep.subr.bf16.mxu0 0
    %449 = vmatpush1.bf16.msra.mxu0 0
    %450 = vmatprep.subr.bf16.mxu0 0
    %451 = vmatpush1.bf16.msra.mxu0 0
    %452 = vmatprep.subr.bf16.mxu0 0
    %453 = vmatpush1.bf16.msra.mxu0 0
    %454 = vmatprep.subr.bf16.mxu0 0
    %455 = vmatpush1.bf16.msra.mxu0 0
    %456 = vmatprep.subr.bf16.mxu0 0
    %457 = vmatpush1.bf16.msra.mxu0 0
    %458 = vmatprep.subr.bf16.mxu0 0
    %459 = vmatpush1.bf16.msra.mxu0 0
    %460 = vmatprep.subr.bf16.mxu0 0
    %461 = vmatpush1.bf16.msra.mxu0 0
    %462 = vmatprep.subr.bf16.mxu0 0
    %463 = vmatpush1.bf16.msra.mxu0 0
    %464 = vmatprep.subr.bf16.mxu0 0
    %465 = vmatpush1.bf16.msra.mxu0 0
    %466 = vmatprep.mubr.bf16.mxu0 0
    %467 = vmatmul.mubr.bf16.gmra.mrb[0].mxu0 %v369
    %v468 = vpop.f32.mrb[0].mxu0
    %v469 = vadd.f32 %v109, %v468
    %v470 = vpop.f32.mrb[0].mxu0
    %v471 = vadd.f32 %v113, %v470
    %v472 = vpop.f32.mrb[0].mxu0
    %v473 = vpop.f32.mrb[0].mxu0
    %474 = vdwg.mxu0
    %475 = vmatprep.subr.bf16.mxu0 %v281
    %476 = vmatpush1.bf16.msra.mxu0 %v280
    %477 = vmatprep.subr.bf16.mxu0 %v288
    %478 = vmatpush1.bf16.msra.mxu0 %v287
    %479 = vmatprep.subr.bf16.mxu0 %v295
    %480 = vmatpush1.bf16.msra.mxu0 %v294
    %481 = vmatprep.subr.bf16.mxu0 %v302
    %482 = vmatpush1.bf16.msra.mxu0 %v301
    %483 = vmatprep.subr.bf16.mxu0 %v309
    %484 = vmatpush1.bf16.msra.mxu0 %v308
    %485 = vmatprep.subr.bf16.mxu0 %v316
    %486 = vmatpush1.bf16.msra.mxu0 %v315
    %487 = vmatprep.subr.bf16.mxu0 %v388
    %488 = vmatpush1.bf16.msra.mxu0 %v385
    %489 = vmatprep.subr.bf16.mxu0 0
    %490 = vmatpush1.bf16.msra.mxu0 0
    %491 = vmatprep.subr.bf16.mxu0 0
    %492 = vmatpush1.bf16.msra.mxu0 0
    %493 = vmatprep.subr.bf16.mxu0 0
    %494 = vmatpush1.bf16.msra.mxu0 0
    %495 = vmatprep.subr.bf16.mxu0 0
    %496 = vmatpush1.bf16.msra.mxu0 0
    %497 = vmatprep.subr.bf16.mxu0 0
    %498 = vmatpush1.bf16.msra.mxu0 0
    %499 = vmatprep.subr.bf16.mxu0 0
    %500 = vmatpush1.bf16.msra.mxu0 0
    %501 = vmatprep.subr.bf16.mxu0 0
    %502 = vmatpush1.bf16.msra.mxu0 0
    %503 = vmatprep.subr.bf16.mxu0 0
    %504 = vmatpush1.bf16.msra.mxu0 0
    %505 = vmatprep.subr.bf16.mxu0 0
    %506 = vmatpush1.bf16.msra.mxu0 0
    %507 = vmatprep.mubr.bf16.mxu0 0
    %508 = vmatmul.mubr.bf16.gmra.mrb[0].mxu0 %v369
    %v509 = vpop.f32.mrb[0].mxu0
    %v510 = vadd.f32 %v117, %v509
    %v511 = vpop.f32.mrb[0].mxu0
    %v512 = vadd.f32 %v121, %v511
    %v513 = vpop.f32.mrb[0].mxu0
    %v514 = vpop.f32.mrb[0].mxu0
    %515 = vdwg.mxu0
    %516 = vmatprep.subr.bf16.mxu0 0
    %517 = vmatpush1.bf16.msra.mxu0 %v282
    %518 = vmatprep.subr.bf16.mxu0 0
    %519 = vmatpush1.bf16.msra.mxu0 %v289
    %520 = vmatprep.subr.bf16.mxu0 0
    %521 = vmatpush1.bf16.msra.mxu0 %v296
    %522 = vmatprep.subr.bf16.mxu0 0
    %523 = vmatpush1.bf16.msra.mxu0 %v303
    %524 = vmatprep.subr.bf16.mxu0 0
    %525 = vmatpush1.bf16.msra.mxu0 %v310
    %526 = vmatprep.subr.bf16.mxu0 0
    %527 = vmatpush1.bf16.msra.mxu0 %v317
    %528 = vmatprep.subr.bf16.mxu0 0
    %529 = vmatpush1.bf16.msra.mxu0 %v391
    %530 = vmatprep.subr.bf16.mxu0 0
    %531 = vmatpush1.bf16.msra.mxu0 0
    %532 = vmatprep.subr.bf16.mxu0 0
    %533 = vmatpush1.bf16.msra.mxu0 0
    %534 = vmatprep.subr.bf16.mxu0 0
    %535 = vmatpush1.bf16.msra.mxu0 0
    %536 = vmatprep.subr.bf16.mxu0 0
    %537 = vmatpush1.bf16.msra.mxu0 0
    %538 = vmatprep.subr.bf16.mxu0 0
    %539 = vmatpush1.bf16.msra.mxu0 0
    %540 = vmatprep.subr.bf16.mxu0 0
    %541 = vmatpush1.bf16.msra.mxu0 0
    %542 = vmatprep.subr.bf16.mxu0 0
    %543 = vmatpush1.bf16.msra.mxu0 0
    %544 = vmatprep.subr.bf16.mxu0 0
    %545 = vmatpush1.bf16.msra.mxu0 0
    %546 = vmatprep.subr.bf16.mxu0 0
    %547 = vmatpush1.bf16.msra.mxu0 0
    %548 = vmatprep.mubr.bf16.mxu0 0
    %549 = vmatmul.mubr.bf16.gmra.mrb[0].mxu0 %v369
    %v550 = vpop.f32.mrb[0].mxu0
    %v551 = vadd.f32 %v125, %v550
    %v552 = vpop.f32.mrb[0].mxu0
    %v553 = vpop.f32.mrb[0].mxu0
    %v554 = vpop.f32.mrb[0].mxu0
    %555 = vdwg.mxu0
    %v556 = vtanh.pop %v428
    %v557 = vtanh.pop %v430
    %v558 = vtanh.pop %v469
    %v559 = vtanh.pop %v471
    %v560 = vtanh.pop %v510
    %v561 = vtanh.pop %v512
    %v562 = vtanh.pop %v551
    %563 = vst [vmem:[#allocation7] sm:$0xff] %v556
    %564 = vst [vmem:[#allocation7 + $0x8] sm:$0xff] %v557
    %565 = vst [vmem:[#allocation7 + $0x10] sm:$0xff] %v558
    %566 = vst [vmem:[#allocation7 + $0x18] sm:$0xff] %v559
    %567 = vst [vmem:[#allocation7 + $0x20] sm:$0xff] %v560
    %568 = vst [vmem:[#allocation7 + $0x28] sm:$0xff] %v561
    %vm569 = vcmask 130048
    %570 = vst.msk [vmem:[#allocation7 + $0x30] sm:$0xff] %vm569, %v562
    // Predicated region
    $region22: #{_forward_fn.1} parent=1 // pred_check
      _
    $region23: #{_forward_fn.1} parent=1 // pred_check_branch
      %572 = sbr.rel (0) target = $region25
    $region24: #{_forward_fn.1} parent=1 // pred_region
      %s574 = ssub.s32 896, 896
      %575 = vsyncadd [#allocation4], %s574
      %s577 = sshll.u32 [#allocation7], 4
      %s578 = int_to_ptr.vmem [resolvable:$true] %s577
      %580 = dma.vmem_to_hbm [thread:$0]  %s578, 896, %s3, [#allocation4]
    $region25: #{_forward_fn.1} parent=1 // pred_fallthru
      _
    // Predicated region
    $region26: #{_forward_fn.1} parent=1 // pred_check
      _
    $region27: #{_forward_fn.1} parent=1 // pred_check_branch
      %582 = sbr.rel (0) target = $region29
    $region28: #{_forward_fn.1} parent=1 // pred_region
      %583 = dma.done [#allocation4], 896
    $region29: #{_forward_fn.1} parent=1 // pred_fallthru
      _
    %584 = vsyncpa [#allocation3], 1
    %585 = vsyncpa [#allocation6], 1
    %586 = vsyncpa [#allocation4], 1

</llo_original>
